<compile_context>
chip_gen: v7x
topology: tpu7x:2x2x1
jax: 0.10.0
libtpu: 0.0.40
codegen_flags: <defaults>
</compile_context>

<pallas_src>
import jax
import jax.numpy as jnp
from jax.experimental import pallas as pl
from jax.experimental.pallas import tpu as pltpu

BN_EPS = 1e-5
C_PAD = 128       # lane-dense padded output-channel count
TILE_P = 512      # rows of the flattened (N*H*W) axis per grid step


def _round_up(x, m):
    return ((x + m - 1) // m) * m


# ---------------- pass 1: conv + per-tile partial batch statistics ----------------
def _conv_stats_kernel(patches_ref, w_ref, stats_ref):
    # patches_ref: (tile_p, K) bf16    w_ref: (K, C_PAD) bf16 (resident)
    # stats_ref:   (1, 2, C_PAD) f32   row 0 = sum, row 1 = sum of squares
    conv = jnp.dot(patches_ref[...], w_ref[...],
                   preferred_element_type=jnp.float32)           # (tile_p, C_PAD)
    stats_ref[0, 0:1, :] = jnp.sum(conv, axis=0, keepdims=True)
    stats_ref[0, 1:2, :] = jnp.sum(conv * conv, axis=0, keepdims=True)


# ---------------- pass 2: recompute conv, fused BN affine + PReLU -----------------
def _bn_prelu_kernel(alpha_ref, patches_ref, w_ref, scale_ref, shift_ref, o_ref):
    # alpha_ref: (1,) f32 in SMEM      scale/shift: (1, C_PAD) f32 (resident)
    conv = jnp.dot(patches_ref[...], w_ref[...],
                   preferred_element_type=jnp.float32)           # (tile_p, C_PAD)
    y = conv * scale_ref[...] + shift_ref[...]
    a = alpha_ref[0]
    o_ref[...] = jnp.where(y >= 0.0, y, y * a)


def basic_block_forward(x, conv_w, conv_b, bn_gamma, bn_beta, prelu_a,
                        kernel_h=3, kernel_w=3, tile_p=TILE_P):
    """x: NCHW float32. Returns NCHW float32 (matches nn.Conv2d+BatchNorm2d+PReLU,
    with BatchNorm in training mode, i.e. biased batch statistics)."""
    N, Cin, H, W = x.shape
    Cout = conv_w.shape[0]
    ph, pw = (kernel_h - 1) // 2, (kernel_w - 1) // 2
    K = Cin * kernel_h * kernel_w
    P = N * H * W

    # conv bias is mathematically cancelled by the BN batch-mean subtraction.
    del conv_b

    # im2col in the wrapper (bf16 to halve patch-matrix HBM bytes).
    # Patch ordering matches PyTorch weight layout (Cout, Cin, kh, kw).
    # TODO(synk): for larger Cin, build patches in-kernel from halo tiles to avoid
    # materializing the K-times-larger patch matrix in HBM at all.
    xp = jnp.pad(x, ((0, 0), (0, 0), (ph, ph), (pw, pw)))
    pats = jnp.stack(
        [xp[:, :, i:i + H, j:j + W] for i in range(kernel_h) for j in range(kernel_w)],
        axis=2)                                       # (N, Cin, kh*kw, H, W)
    pats = pats.reshape(N, K, H, W).transpose(0, 2, 3, 1).reshape(P, K)

    # Pad rows to a multiple of the tile; zero rows (no bias) contribute 0 to stats.
    tp = min(tile_p, _round_up(P, 8))
    P_pad = _round_up(P, tp)
    if P_pad != P:
        pats = jnp.pad(pats, ((0, P_pad - P), (0, 0)))
    pats = pats.astype(jnp.bfloat16)
    T = P_pad // tp

    # Weights: (Cout, Cin, kh, kw) -> (K, C_PAD) bf16, zero-padded to 128 lanes.
    w_mat = conv_w.reshape(Cout, K).T
    w_mat = jnp.pad(w_mat, ((0, 0), (0, C_PAD - Cout))).astype(jnp.bfloat16)

    cparams = pltpu.CompilerParams(
        dimension_semantics=("parallel",),
        vmem_limit_bytes=32 * 1024 * 1024)

    # ---- pass 1 --------------------------------------------------------------
    partial = pl.pallas_call(
        _conv_stats_kernel,
        out_shape=jax.ShapeDtypeStruct((T, 2, C_PAD), jnp.float32),
        grid=(T,),
        in_specs=[pl.BlockSpec((tp, K), lambda i: (i, 0)),
                  pl.BlockSpec((K, C_PAD), lambda i: (0, 0))],
        out_specs=pl.BlockSpec((1, 2, C_PAD), lambda i: (i, 0, 0)),
        compiler_params=cparams,
    )(pats, w_mat)

    # Global biased batch statistics over the true P rows (tiny, plain JAX).
    sums = jnp.sum(partial, axis=0)                  # (2, C_PAD)
    mean = sums[0] / P
    var = jnp.maximum(sums[1] / P - mean * mean, 0.0)
    inv_std = jax.lax.rsqrt(var + BN_EPS)

    gamma = jnp.pad(bn_gamma.astype(jnp.float32), (0, C_PAD - Cout))
    beta = jnp.pad(bn_beta.astype(jnp.float32), (0, C_PAD - Cout))
    scale = (gamma * inv_std).reshape(1, C_PAD)
    shift = (beta - mean * gamma * inv_std).reshape(1, C_PAD)
    alpha = prelu_a.reshape(-1)[:1].astype(jnp.float32)   # (1,) scalar for SMEM

    # ---- pass 2 --------------------------------------------------------------
    out_flat = pl.pallas_call(
        _bn_prelu_kernel,
        out_shape=jax.ShapeDtypeStruct((P_pad, C_PAD), jnp.float32),
        grid=(T,),
        in_specs=[pl.BlockSpec(memory_space=pltpu.MemorySpace.SMEM),   # alpha
                  pl.BlockSpec((tp, K), lambda i: (i, 0)),             # patches
                  pl.BlockSpec((K, C_PAD), lambda i: (0, 0)),          # weights
                  pl.BlockSpec((1, C_PAD), lambda i: (0, 0)),          # scale
                  pl.BlockSpec((1, C_PAD), lambda i: (0, 0))],         # shift
        out_specs=pl.BlockSpec((tp, C_PAD), lambda i: (i, 0)),
        compiler_params=cparams,
    )(alpha, pats, w_mat, scale, shift)

    # Match the PyTorch module contract (NCHW). Keep channel-last / fuse into the
    # consumer when the surrounding pipeline allows.
    out = out_flat[:P, :Cout].reshape(N, H, W, Cout)
    return out.transpose(0, 3, 1, 2)


def _reference_forward(x, conv_w, conv_b, bn_gamma, bn_beta, prelu_a):
    """Pure-JAX f32 reference of the PyTorch module (training-mode BN)."""
    conv = jax.lax.conv_general_dilated(
        x, conv_w, window_strides=(1, 1), padding=((1, 1), (1, 1)),
        dimension_numbers=("NCHW", "OIHW", "NCHW"))
    conv = conv + conv_b.reshape(1, -1, 1, 1)
    mean = jnp.mean(conv, axis=(0, 2, 3), keepdims=True)
    var = jnp.mean((conv - mean) ** 2, axis=(0, 2, 3), keepdims=True)
    bn = (conv - mean) * jax.lax.rsqrt(var + BN_EPS)
    bn = bn * bn_gamma.reshape(1, -1, 1, 1) + bn_beta.reshape(1, -1, 1, 1)
    a = prelu_a.reshape(())
    return jnp.where(bn >= 0, bn, bn * a)


if __name__ == "__main__":
    params = {
        'num_channels': 1,
        'num_filters': 64,
        'kernel_h': 3,
        'kernel_w': 3,
        'stride_conv': 1,
        'pool': 2,
        'stride_pool': 2,
        'num_classes': 4,
    }

    key = jax.random.PRNGKey(0)
    k_x, k_w, k_b = jax.random.split(key, 3)

    N, Cin, H, W = 2, params['num_channels'], 16, 16
    Cout = params['num_filters']
    kh, kw = params['kernel_h'], params['kernel_w']

    x = jax.random.normal(k_x, (N, Cin, H, W), dtype=jnp.float32)

    # Deterministic parameter init (shapes match the nn.Module).
    fan_in = Cin * kh * kw
    bound = 1.0 / (fan_in ** 0.5)
    conv_w = jax.random.uniform(k_w, (Cout, Cin, kh, kw), jnp.float32, -bound, bound)
    conv_b = jax.random.uniform(k_b, (Cout,), jnp.float32, -bound, bound)
    bn_gamma = jnp.ones((Cout,), jnp.float32)
    bn_beta = jnp.zeros((Cout,), jnp.float32)
    prelu_a = jnp.array([0.25], jnp.float32)  # PReLU default init

    out = basic_block_forward(x, conv_w, conv_b, bn_gamma, bn_beta, prelu_a, kh, kw)
    jax.block_until_ready(out)
    assert out.shape == (N, Cout, H, W), out.shape

    # Loose-tolerance check vs. f32 reference (kernel matmul runs in bf16).
    ref = _reference_forward(x, conv_w, conv_b, bn_gamma, bn_beta, prelu_a)
    max_err = float(jnp.max(jnp.abs(out - ref)))
    assert max_err < 0.1, f"max abs error vs reference too large: {max_err}"

    print("KERNEL_OK")
</pallas_src>

<mosaic_0001>
module attributes {stable_mosaic.version = 11 : i64} {
  func.func @_conv_stats_kernel(%arg0: i32, %arg1: memref<512x9xbf16, #tpu.memory_space<vmem>>, %arg2: memref<9x128xbf16, #tpu.memory_space<vmem>>, %arg3: memref<1x2x128xf32, #tpu.memory_space<vmem>>) attributes {dimension_semantics = [#tpu.dimension_semantics<parallel>], iteration_bounds = array<i64: 1>, scalar_prefetch = 0 : i64, scratch_operands = 0 : i64, tpu.core_type = #tpu.core_type<tc>, window_params = [{transform_indices = @transform_0, window_bounds = array<i64: 512, 9>}, {pipeline_mode = #tpu.pipeline_mode<synchronous>, transform_indices = @transform_1, window_bounds = array<i64: 9, 128>}, {transform_indices = @transform_2, window_bounds = array<i64: 1, 2, 128>}]} {
    %c0 = arith.constant 0 : index
    %c0_0 = arith.constant 0 : index
    %0 = vector.load %arg1[%c0, %c0_0] : memref<512x9xbf16, #tpu.memory_space<vmem>>, vector<512x9xbf16>
    %c0_1 = arith.constant 0 : index
    %c0_2 = arith.constant 0 : index
    %1 = vector.load %arg2[%c0_1, %c0_2] : memref<9x128xbf16, #tpu.memory_space<vmem>>, vector<9x128xbf16>
    %cst = arith.constant dense<0.000000e+00> : vector<512x128xf32>
    %2 = tpu.matmul %0, %1, %cst {dimension_numbers = #tpu.dot_dimension_numbers<[1], [0], [0], [1], [0, 0, 1, 1], [], []>} : vector<512x9xbf16>, vector<9x128xbf16>, vector<512x128xf32> -> vector<512x128xf32>
    %cst_3 = arith.constant dense<0.000000e+00> : vector<128xf32>
    %3 = vector.multi_reduction <add>, %2, %cst_3 [0] : vector<512x128xf32> to vector<128xf32>
    %4 = vector.shape_cast %3 : vector<128xf32> to vector<1x128xf32>
    %c0_4 = arith.constant 0 : index
    %c0_5 = arith.constant 0 : index
    %c0_6 = arith.constant 0 : index
    %5 = vector.load %arg3[%c0_4, %c0_5, %c0_6] : memref<1x2x128xf32, #tpu.memory_space<vmem>>, vector<1x1x128xf32>
    %6 = vector.shape_cast %5 : vector<1x1x128xf32> to vector<1x128xf32>
    %7 = vector.shape_cast %4 : vector<1x128xf32> to vector<1x1x128xf32>
    tpu.vector_store %arg3[%c0_4, %c0_5, %c0_6], %7 {strides = array<i32>} : memref<1x2x128xf32, #tpu.memory_space<vmem>>, vector<1x1x128xf32>,
    %8 = arith.mulf %2, %2 : vector<512x128xf32>
    %cst_7 = arith.constant dense<0.000000e+00> : vector<128xf32>
    %9 = vector.multi_reduction <add>, %8, %cst_7 [0] : vector<512x128xf32> to vector<128xf32>
    %10 = vector.shape_cast %9 : vector<128xf32> to vector<1x128xf32>
    %c0_8 = arith.constant 0 : index
    %c1 = arith.constant 1 : index
    %c0_9 = arith.constant 0 : index
    %11 = vector.load %arg3[%c0_8, %c1, %c0_9] : memref<1x2x128xf32, #tpu.memory_space<vmem>>, vector<1x1x128xf32>
    %12 = vector.shape_cast %11 : vector<1x1x128xf32> to vector<1x128xf32>
    %13 = vector.shape_cast %10 : vector<1x128xf32> to vector<1x1x128xf32>
    tpu.vector_store %arg3[%c0_8, %c1, %c0_9], %13 {strides = array<i32>} : memref<1x2x128xf32, #tpu.memory_space<vmem>>, vector<1x1x128xf32>,
    return
  }
  func.func @transform_0(%arg0: i32) -> (i32, i32) {
    %c0_i32 = arith.constant 0 : i32
    %c0_i32_0 = arith.constant 0 : i32
    return %arg0, %c0_i32 : i32, i32
  }
  func.func @transform_1(%arg0: i32) -> (i32, i32) {
    %c0_i32 = arith.constant 0 : i32
    %c0_i32_0 = arith.constant 0 : i32
    %c0_i32_1 = arith.constant 0 : i32
    return %c0_i32, %c0_i32_0 : i32, i32
  }
  func.func @transform_2(%arg0: i32) -> (i32, i32, i32) {
    %c0_i32 = arith.constant 0 : i32
    %c0_i32_0 = arith.constant 0 : i32
    %c0_i32_1 = arith.constant 0 : i32
    return %arg0, %c0_i32, %c0_i32_0 : i32, i32, i32
  }
}

</mosaic_0001>

<llo_original>
// kernel: tpu_custom_call.1
$region0: #{tpu_custom_call.1}
  #allocation0 [shape = 'u32[]', space=smem, size = 0x4, offset = 0x4, fixed_abs, tag = 'smem constant byte address 0x4 - core index']
  #allocation1 [shape = 'u32[144,128]{1,0:T(1,128)}', space=vmem, size = 0x12000, scoped, tag = 'internal scratch']
  %s0 = inlined_call_operand.vmem [shape: bf16[512,9], index: 0, kind: input, shape index: {}]
  %s1 = inlined_call_operand.vmem [shape: bf16[9,128], index: 1, kind: input, shape index: {}]
  %s2 = inlined_call_operand.hbm [shape: f32[1,2,128], index: 2, kind: output, shape index: {}]
  %s3 = sld [smem:[#allocation0]]
  $region18: #{tpu_custom_call.1} parent=0
    _
  %s5 = ssub.s32 1, %s3
  %s6 = scalar_select 0, %s5, %s3
  $region1: #{tpu_custom_call.1} parent=0
    #allocation2 [shape = 'u8[1024]{0}', space=vmem, size = 0x400, scoped, tag = 'output window, operand 0, single buffered']
    #allocation3 [shape = 's32[1]{0}', space=sflag, size = 0x4, scoped, tag = 'scoped memory for tpu_custom_call.1']
    %7 = vsyncpa [#allocation3], 0
    // Predicated region
    $region2: #{tpu_custom_call.1} parent=1 // pred_check
      _
    $region3: #{tpu_custom_call.1} parent=1 // pred_check_branch
      %9 = sbr.rel (0) target = $region5
    $region4: #{tpu_custom_call.1} parent=1 // pred_region
      _
    $region5: #{tpu_custom_call.1} parent=1 // pred_fallthru
      _
    // Predicated region
    $region6: #{tpu_custom_call.1} parent=1 // pred_check
      _
    $region7: #{tpu_custom_call.1} parent=1 // pred_check_branch
      %11 = sbr.rel (0) target = $region9
    $region8: #{tpu_custom_call.1} parent=1 // pred_region
      _
    $region9: #{tpu_custom_call.1} parent=1 // pred_fallthru
      _
    %v13 = vld [vmem:[%s0] sm:$0xf]
    %v14 = vld [vmem:[%s0 + $0x4] sm:$0xf]
    %v15 = vld [vmem:[%s0 + $0x8] sm:$0xf]
    %v16 = vld [vmem:[%s0 + $0xc] sm:$0xf]
    %v17 = vld [vmem:[%s0 + $0x10] sm:$0xf]
    %v18 = vld [vmem:[%s0 + $0x14] sm:$0xf]
    %v19 = vld [vmem:[%s0 + $0x18] sm:$0xf]
    %v20 = vld [vmem:[%s0 + $0x1c] sm:$0xf]
    %v21 = vld [vmem:[%s0 + $0x20] sm:$0xf]
    %v22 = vld [vmem:[%s0 + $0x24] sm:$0xf]
    %v23 = vld [vmem:[%s0 + $0x28] sm:$0xf]
    %v24 = vld [vmem:[%s0 + $0x2c] sm:$0xf]
    %v25 = vld [vmem:[%s0 + $0x30] sm:$0xf]
    %v26 = vld [vmem:[%s0 + $0x34] sm:$0xf]
    %v27 = vld [vmem:[%s0 + $0x38] sm:$0xf]
    %v28 = vld [vmem:[%s0 + $0x3c] sm:$0xf]
    %v29 = vld [vmem:[%s0 + $0x40] sm:$0xf]
    %v30 = vld [vmem:[%s0 + $0x44] sm:$0xf]
    %v31 = vld [vmem:[%s0 + $0x48] sm:$0xf]
    %v32 = vld [vmem:[%s0 + $0x4c] sm:$0xf]
    %v33 = vld [vmem:[%s0 + $0x50] sm:$0xf]
    %v34 = vld [vmem:[%s0 + $0x54] sm:$0xf]
    %v35 = vld [vmem:[%s0 + $0x58] sm:$0xf]
    %v36 = vld [vmem:[%s0 + $0x5c] sm:$0xf]
    %v37 = vld [vmem:[%s0 + $0x60] sm:$0xf]
    %v38 = vld [vmem:[%s0 + $0x64] sm:$0xf]
    %v39 = vld [vmem:[%s0 + $0x68] sm:$0xf]
    %v40 = vld [vmem:[%s0 + $0x6c] sm:$0xf]
    %v41 = vld [vmem:[%s0 + $0x70] sm:$0xf]
    %v42 = vld [vmem:[%s0 + $0x74] sm:$0xf]
    %v43 = vld [vmem:[%s0 + $0x78] sm:$0xf]
    %v44 = vld [vmem:[%s0 + $0x7c] sm:$0xf]
    %v45 = vld [vmem:[%s0 + $0x80] sm:$0xf]
    %v46 = vld [vmem:[%s0 + $0x84] sm:$0xf]
    %v47 = vld [vmem:[%s0 + $0x88] sm:$0xf]
    %v48 = vld [vmem:[%s0 + $0x8c] sm:$0xf]
    %v49 = vld [vmem:[%s0 + $0x90] sm:$0xf]
    %v50 = vld [vmem:[%s0 + $0x94] sm:$0xf]
    %v51 = vld [vmem:[%s0 + $0x98] sm:$0xf]
    %v52 = vld [vmem:[%s0 + $0x9c] sm:$0xf]
    %v53 = vld [vmem:[%s0 + $0xa0] sm:$0xf]
    %v54 = vld [vmem:[%s0 + $0xa4] sm:$0xf]
    %v55 = vld [vmem:[%s0 + $0xa8] sm:$0xf]
    %v56 = vld [vmem:[%s0 + $0xac] sm:$0xf]
    %v57 = vld [vmem:[%s0 + $0xb0] sm:$0xf]
    %v58 = vld [vmem:[%s0 + $0xb4] sm:$0xf]
    %v59 = vld [vmem:[%s0 + $0xb8] sm:$0xf]
    %v60 = vld [vmem:[%s0 + $0xbc] sm:$0xf]
    %v61 = vld [vmem:[%s0 + $0xc0] sm:$0xf]
    %v62 = vld [vmem:[%s0 + $0xc4] sm:$0xf]
    %v63 = vld [vmem:[%s0 + $0xc8] sm:$0xf]
    %v64 = vld [vmem:[%s0 + $0xcc] sm:$0xf]
    %v65 = vld [vmem:[%s0 + $0xd0] sm:$0xf]
    %v66 = vld [vmem:[%s0 + $0xd4] sm:$0xf]
    %v67 = vld [vmem:[%s0 + $0xd8] sm:$0xf]
    %v68 = vld [vmem:[%s0 + $0xdc] sm:$0xf]
    %v69 = vld [vmem:[%s0 + $0xe0] sm:$0xf]
    %v70 = vld [vmem:[%s0 + $0xe4] sm:$0xf]
    %v71 = vld [vmem:[%s0 + $0xe8] sm:$0xf]
    %v72 = vld [vmem:[%s0 + $0xec] sm:$0xf]
    %v73 = vld [vmem:[%s0 + $0xf0] sm:$0xf]
    %v74 = vld [vmem:[%s0 + $0xf4] sm:$0xf]
    %v75 = vld [vmem:[%s0 + $0xf8] sm:$0xf]
    %v76 = vld [vmem:[%s0 + $0xfc] sm:$0xf]
    %v77 = vld [vmem:[%s1] sm:$0xf]
    %v78 = vld [vmem:[%s1 + $0x4] sm:$0x1]
    %v143 = vunpack.c.l.b16 %v13
    %v144 = vunpack.c.l.b16 %v14
    %v145 = vunpack.c.l.b16 %v15
    %v146 = vunpack.c.l.b16 %v16
    %v147 = vunpack.c.l.b16 %v17
    %v148 = vunpack.c.l.b16 %v18
    %v149 = vunpack.c.l.b16 %v19
    %v150 = vunpack.c.l.b16 %v20
    %v151 = vunpack.c.l.b16 %v21
    %v152 = vunpack.c.l.b16 %v22
    %v153 = vunpack.c.l.b16 %v23
    %v154 = vunpack.c.l.b16 %v24
    %v155 = vunpack.c.l.b16 %v25
    %v156 = vunpack.c.l.b16 %v26
    %v157 = vunpack.c.l.b16 %v27
    %v158 = vunpack.c.l.b16 %v28
    %v159 = vunpack.c.l.b16 %v29
    %v160 = vunpack.c.l.b16 %v30
    %v161 = vunpack.c.l.b16 %v31
    %v162 = vunpack.c.l.b16 %v32
    %v163 = vunpack.c.l.b16 %v33
    %v164 = vunpack.c.l.b16 %v34
    %v165 = vunpack.c.l.b16 %v35
    %v166 = vunpack.c.l.b16 %v36
    %v167 = vunpack.c.l.b16 %v37
    %v168 = vunpack.c.l.b16 %v38
    %v169 = vunpack.c.l.b16 %v39
    %v170 = vunpack.c.l.b16 %v40
    %v171 = vunpack.c.l.b16 %v41
    %v172 = vunpack.c.l.b16 %v42
    %v173 = vunpack.c.l.b16 %v43
    %v174 = vunpack.c.l.b16 %v44
    %v175 = vunpack.c.l.b16 %v45
    %v176 = vunpack.c.l.b16 %v46
    %v177 = vunpack.c.l.b16 %v47
    %v178 = vunpack.c.l.b16 %v48
    %v179 = vunpack.c.l.b16 %v49
    %v180 = vunpack.c.l.b16 %v50
    %v181 = vunpack.c.l.b16 %v51
    %v182 = vunpack.c.l.b16 %v52
    %v183 = vunpack.c.l.b16 %v53
    %v184 = vunpack.c.l.b16 %v54
    %v185 = vunpack.c.l.b16 %v55
    %v186 = vunpack.c.l.b16 %v56
    %v187 = vunpack.c.l.b16 %v57
    %v188 = vunpack.c.l.b16 %v58
    %v189 = vunpack.c.l.b16 %v59
    %v190 = vunpack.c.l.b16 %v60
    %v191 = vunpack.c.l.b16 %v61
    %v192 = vunpack.c.l.b16 %v62
    %v193 = vunpack.c.l.b16 %v63
    %v194 = vunpack.c.l.b16 %v64
    %v195 = vunpack.c.l.b16 %v65
    %v196 = vunpack.c.l.b16 %v66
    %v197 = vunpack.c.l.b16 %v67
    %v198 = vunpack.c.l.b16 %v68
    %v199 = vunpack.c.l.b16 %v69
    %v200 = vunpack.c.l.b16 %v70
    %v201 = vunpack.c.l.b16 %v71
    %v202 = vunpack.c.l.b16 %v72
    %v203 = vunpack.c.l.b16 %v73
    %v204 = vunpack.c.l.b16 %v74
    %v205 = vunpack.c.l.b16 %v75
    %v206 = vunpack.c.l.b16 %v76
    %v207 = vpack.c.b16 %v144, %v143
    %v208 = vpack.c.b16 %v146, %v145
    %v209 = vpack.c.b16 %v148, %v147
    %v210 = vpack.c.b16 %v150, %v149
    %v211 = vpack.c.b16 %v152, %v151
    %v212 = vpack.c.b16 %v154, %v153
    %v213 = vpack.c.b16 %v156, %v155
    %v214 = vpack.c.b16 %v158, %v157
    %v215 = vpack.c.b16 %v160, %v159
    %v216 = vpack.c.b16 %v162, %v161
    %v217 = vpack.c.b16 %v164, %v163
    %v218 = vpack.c.b16 %v166, %v165
    %v219 = vpack.c.b16 %v168, %v167
    %v220 = vpack.c.b16 %v170, %v169
    %v221 = vpack.c.b16 %v172, %v171
    %v222 = vpack.c.b16 %v174, %v173
    %v223 = vpack.c.b16 %v176, %v175
    %v224 = vpack.c.b16 %v178, %v177
    %v225 = vpack.c.b16 %v180, %v179
    %v226 = vpack.c.b16 %v182, %v181
    %v227 = vpack.c.b16 %v184, %v183
    %v228 = vpack.c.b16 %v186, %v185
    %v229 = vpack.c.b16 %v188, %v187
    %v230 = vpack.c.b16 %v190, %v189
    %v231 = vpack.c.b16 %v192, %v191
    %v232 = vpack.c.b16 %v194, %v193
    %v233 = vpack.c.b16 %v196, %v195
    %v234 = vpack.c.b16 %v198, %v197
    %v235 = vpack.c.b16 %v200, %v199
    %v236 = vpack.c.b16 %v202, %v201
    %v237 = vpack.c.b16 %v204, %v203
    %v238 = vpack.c.b16 %v206, %v205
    %v241 = vunpack.c.l.b16 %v77
    %v242 = vunpack.c.l.b16 %v78
    %v243 = vpack.c.b16 %v242, %v241
    %vm244 = vcmask 72704
    %v246 = vsel %vm244, %v207, 0
    %v249 = vsel %vm244, %v208, 0
    %v252 = vsel %vm244, %v209, 0
    %v255 = vsel %vm244, %v210, 0
    %v258 = vsel %vm244, %v211, 0
    %v261 = vsel %vm244, %v212, 0
    %v264 = vsel %vm244, %v213, 0
    %v267 = vsel %vm244, %v214, 0
    %v270 = vsel %vm244, %v215, 0
    %v273 = vsel %vm244, %v216, 0
    %v276 = vsel %vm244, %v217, 0
    %v279 = vsel %vm244, %v218, 0
    %v282 = vsel %vm244, %v219, 0
    %v285 = vsel %vm244, %v220, 0
    %v288 = vsel %vm244, %v221, 0
    %v291 = vsel %vm244, %v222, 0
    %v294 = vsel %vm244, %v223, 0
    %v297 = vsel %vm244, %v224, 0
    %v300 = vsel %vm244, %v225, 0
    %v303 = vsel %vm244, %v226, 0
    %v306 = vsel %vm244, %v227, 0
    %v309 = vsel %vm244, %v228, 0
    %v312 = vsel %vm244, %v229, 0
    %v315 = vsel %vm244, %v230, 0
    %v318 = vsel %vm244, %v231, 0
    %v321 = vsel %vm244, %v232, 0
    %v324 = vsel %vm244, %v233, 0
    %v327 = vsel %vm244, %v234, 0
    %v330 = vsel %vm244, %v235, 0
    %v333 = vsel %vm244, %v236, 0
    %v336 = vsel %vm244, %v237, 0
    %v339 = vsel %vm244, %v238, 0
    %vm341 = vcmask 1043456
    %vm342 = vcmask 1044480
    %v343 = vsel %vm341, 4294967295, 65535
    %v344 = vsel %vm342, %v343, 0
    %v346 = vand.u32 %v243, %v344
    %348 = vmatprep.subr.bf16.mxu0 0
    %349 = vmatpush1.bf16.msra.mxu0 %v346
    %350 = vmatprep.subr.bf16.mxu0 0
    %351 = vmatpush1.bf16.msra.mxu0 0
    %352 = vmatprep.subr.bf16.mxu0 0
    %353 = vmatpush1.bf16.msra.mxu0 0
    %354 = vmatprep.subr.bf16.mxu0 0
    %355 = vmatpush1.bf16.msra.mxu0 0
    %356 = vmatprep.subr.bf16.mxu0 0
    %357 = vmatpush1.bf16.msra.mxu0 0
    %358 = vmatprep.subr.bf16.mxu0 0
    %359 = vmatpush1.bf16.msra.mxu0 0
    %360 = vmatprep.subr.bf16.mxu0 0
    %361 = vmatpush1.bf16.msra.mxu0 0
    %362 = vmatprep.subr.bf16.mxu0 0
    %363 = vmatpush1.bf16.msra.mxu0 0
    %364 = vmatprep.subr.bf16.mxu0 0
    %365 = vmatpush1.bf16.msra.mxu0 0
    %366 = vmatprep.subr.bf16.mxu0 0
    %367 = vmatpush1.bf16.msra.mxu0 0
    %368 = vmatprep.subr.bf16.mxu0 0
    %369 = vmatpush1.bf16.msra.mxu0 0
    %370 = vmatprep.subr.bf16.mxu0 0
    %371 = vmatpush1.bf16.msra.mxu0 0
    %372 = vmatprep.subr.bf16.mxu0 0
    %373 = vmatpush1.bf16.msra.mxu0 0
    %374 = vmatprep.subr.bf16.mxu0 0
    %375 = vmatpush1.bf16.msra.mxu0 0
    %376 = vmatprep.subr.bf16.mxu0 0
    %377 = vmatpush1.bf16.msra.mxu0 0
    %378 = vmatprep.subr.bf16.mxu0 0
    %379 = vmatpush1.bf16.msra.mxu0 0
    %380 = vmatprep.mubr.bf16.mxu0 0
    %381 = vmatmul.mubr.bf16.gmra.mrb[0].mxu0 %v246
    %v382 = vpop.f32.mrb[0].mxu0
    %v383 = vadd.f32 0.0, %v382
    %v384 = vpop.f32.mrb[0].mxu0
    %v385 = vpop.f32.mrb[0].mxu0
    %v386 = vadd.f32 0.0, %v385
    %v387 = vpop.f32.mrb[0].mxu0
    %388 = vmatprep.mubr.bf16.mxu0 0
    %389 = vmatmul.mubr.bf16.gmra.mrb[0].mxu0 %v249
    %v390 = vpop.f32.mrb[0].mxu0
    %v391 = vadd.f32 0.0, %v390
    %v392 = vpop.f32.mrb[0].mxu0
    %v393 = vpop.f32.mrb[0].mxu0
    %v394 = vadd.f32 0.0, %v393
    %v395 = vpop.f32.mrb[0].mxu0
    %396 = vmatprep.mubr.bf16.mxu0 0
    %397 = vmatmul.mubr.bf16.gmra.mrb[0].mxu0 %v252
    %v398 = vpop.f32.mrb[0].mxu0
    %v399 = vadd.f32 0.0, %v398
    %v400 = vpop.f32.mrb[0].mxu0
    %v401 = vpop.f32.mrb[0].mxu0
    %v402 = vadd.f32 0.0, %v401
    %v403 = vpop.f32.mrb[0].mxu0
    %404 = vmatprep.mubr.bf16.mxu0 0
    %405 = vmatmul.mubr.bf16.gmra.mrb[0].mxu0 %v255
    %v406 = vpop.f32.mrb[0].mxu0
    %v407 = vadd.f32 0.0, %v406
    %v408 = vpop.f32.mrb[0].mxu0
    %v409 = vpop.f32.mrb[0].mxu0
    %v410 = vadd.f32 0.0, %v409
    %v411 = vpop.f32.mrb[0].mxu0
    %412 = vmatprep.mubr.bf16.mxu0 0
    %413 = vmatmul.mubr.bf16.gmra.mrb[0].mxu0 %v258
    %v414 = vpop.f32.mrb[0].mxu0
    %v415 = vadd.f32 0.0, %v414
    %v416 = vpop.f32.mrb[0].mxu0
    %v417 = vpop.f32.mrb[0].mxu0
    %v418 = vadd.f32 0.0, %v417
    %v419 = vpop.f32.mrb[0].mxu0
    %420 = vmatprep.mubr.bf16.mxu0 0
    %421 = vmatmul.mubr.bf16.gmra.mrb[0].mxu0 %v261
    %v422 = vpop.f32.mrb[0].mxu0
    %v423 = vadd.f32 0.0, %v422
    %v424 = vpop.f32.mrb[0].mxu0
    %v425 = vpop.f32.mrb[0].mxu0
    %v426 = vadd.f32 0.0, %v425
    %v427 = vpop.f32.mrb[0].mxu0
    %428 = vmatprep.mubr.bf16.mxu0 0
    %429 = vmatmul.mubr.bf16.gmra.mrb[0].mxu0 %v264
    %v430 = vpop.f32.mrb[0].mxu0
    %v431 = vadd.f32 0.0, %v430
    %v432 = vpop.f32.mrb[0].mxu0
    %v433 = vpop.f32.mrb[0].mxu0
    %v434 = vadd.f32 0.0, %v433
    %v435 = vpop.f32.mrb[0].mxu0
    %436 = vmatprep.mubr.bf16.mxu0 0
    %437 = vmatmul.mubr.bf16.gmra.mrb[0].mxu0 %v267
    %v438 = vpop.f32.mrb[0].mxu0
    %v439 = vadd.f32 0.0, %v438
    %v440 = vpop.f32.mrb[0].mxu0
    %v441 = vpop.f32.mrb[0].mxu0
    %v442 = vadd.f32 0.0, %v441
    %v443 = vpop.f32.mrb[0].mxu0
    %444 = vmatprep.mubr.bf16.mxu0 0
    %445 = vmatmul.mubr.bf16.gmra.mrb[0].mxu0 %v270
    %v446 = vpop.f32.mrb[0].mxu0
    %v447 = vadd.f32 0.0, %v446
    %v448 = vpop.f32.mrb[0].mxu0
    %v449 = vpop.f32.mrb[0].mxu0
    %v450 = vadd.f32 0.0, %v449
    %v451 = vpop.f32.mrb[0].mxu0
    %452 = vmatprep.mubr.bf16.mxu0 0
    %453 = vmatmul.mubr.bf16.gmra.mrb[0].mxu0 %v273
    %v454 = vpop.f32.mrb[0].mxu0
    %v455 = vadd.f32 0.0, %v454
    %v456 = vpop.f32.mrb[0].mxu0
    %v457 = vpop.f32.mrb[0].mxu0
    %v458 = vadd.f32 0.0, %v457
    %v459 = vpop.f32.mrb[0].mxu0
    %460 = vmatprep.mubr.bf16.mxu0 0
    %461 = vmatmul.mubr.bf16.gmra.mrb[0].mxu0 %v276
    %v462 = vpop.f32.mrb[0].mxu0
    %v463 = vadd.f32 0.0, %v462
    %v464 = vpop.f32.mrb[0].mxu0
    %v465 = vpop.f32.mrb[0].mxu0
    %v466 = vadd.f32 0.0, %v465
    %v467 = vpop.f32.mrb[0].mxu0
    %468 = vmatprep.mubr.bf16.mxu0 0
    %469 = vmatmul.mubr.bf16.gmra.mrb[0].mxu0 %v279
    %v470 = vpop.f32.mrb[0].mxu0
    %v471 = vadd.f32 0.0, %v470
    %v472 = vpop.f32.mrb[0].mxu0
    %v473 = vpop.f32.mrb[0].mxu0
    %v474 = vadd.f32 0.0, %v473
    %v475 = vpop.f32.mrb[0].mxu0
    %476 = vmatprep.mubr.bf16.mxu0 0
    %477 = vmatmul.mubr.bf16.gmra.mrb[0].mxu0 %v282
    %v478 = vpop.f32.mrb[0].mxu0
    %v479 = vadd.f32 0.0, %v478
    %v480 = vpop.f32.mrb[0].mxu0
    %v481 = vpop.f32.mrb[0].mxu0
    %v482 = vadd.f32 0.0, %v481
    %v483 = vpop.f32.mrb[0].mxu0
    %484 = vmatprep.mubr.bf16.mxu0 0
    %485 = vmatmul.mubr.bf16.gmra.mrb[0].mxu0 %v285
    %v486 = vpop.f32.mrb[0].mxu0
    %v487 = vadd.f32 0.0, %v486
    %v488 = vpop.f32.mrb[0].mxu0
    %v489 = vpop.f32.mrb[0].mxu0
    %v490 = vadd.f32 0.0, %v489
    %v491 = vpop.f32.mrb[0].mxu0
    %492 = vmatprep.mubr.bf16.mxu0 0
    %493 = vmatmul.mubr.bf16.gmra.mrb[0].mxu0 %v288
    %v494 = vpop.f32.mrb[0].mxu0
    %v495 = vadd.f32 0.0, %v494
    %v496 = vpop.f32.mrb[0].mxu0
    %v497 = vpop.f32.mrb[0].mxu0
    %v498 = vadd.f32 0.0, %v497
    %v499 = vpop.f32.mrb[0].mxu0
    %500 = vmatprep.mubr.bf16.mxu0 0
    %501 = vmatmul.mubr.bf16.gmra.mrb[0].mxu0 %v291
    %v502 = vpop.f32.mrb[0].mxu0
    %v503 = vadd.f32 0.0, %v502
    %v504 = vpop.f32.mrb[0].mxu0
    %v505 = vpop.f32.mrb[0].mxu0
    %v506 = vadd.f32 0.0, %v505
    %v507 = vpop.f32.mrb[0].mxu0
    %508 = vmatprep.mubr.bf16.mxu0 0
    %509 = vmatmul.mubr.bf16.gmra.mrb[0].mxu0 %v294
    %v510 = vpop.f32.mrb[0].mxu0
    %v511 = vadd.f32 0.0, %v510
    %v512 = vpop.f32.mrb[0].mxu0
    %v513 = vpop.f32.mrb[0].mxu0
    %v514 = vadd.f32 0.0, %v513
    %v515 = vpop.f32.mrb[0].mxu0
    %516 = vmatprep.mubr.bf16.mxu0 0
    %517 = vmatmul.mubr.bf16.gmra.mrb[0].mxu0 %v297
    %v518 = vpop.f32.mrb[0].mxu0
    %v519 = vadd.f32 0.0, %v518
    %v520 = vpop.f32.mrb[0].mxu0
    %v521 = vpop.f32.mrb[0].mxu0
    %v522 = vadd.f32 0.0, %v521
    %v523 = vpop.f32.mrb[0].mxu0
    %524 = vmatprep.mubr.bf16.mxu0 0
    %525 = vmatmul.mubr.bf16.gmra.mrb[0].mxu0 %v300
    %v526 = vpop.f32.mrb[0].mxu0
    %v527 = vadd.f32 0.0, %v526
    %v528 = vpop.f32.mrb[0].mxu0
    %v529 = vpop.f32.mrb[0].mxu0
    %v530 = vadd.f32 0.0, %v529
    %v531 = vpop.f32.mrb[0].mxu0
    %532 = vmatprep.mubr.bf16.mxu0 0
    %533 = vmatmul.mubr.bf16.gmra.mrb[0].mxu0 %v303
    %v534 = vpop.f32.mrb[0].mxu0
    %v535 = vadd.f32 0.0, %v534
    %v536 = vpop.f32.mrb[0].mxu0
    %v537 = vpop.f32.mrb[0].mxu0
    %v538 = vadd.f32 0.0, %v537
    %v539 = vpop.f32.mrb[0].mxu0
    %540 = vmatprep.mubr.bf16.mxu0 0
    %541 = vmatmul.mubr.bf16.gmra.mrb[0].mxu0 %v306
    %v542 = vpop.f32.mrb[0].mxu0
    %v543 = vadd.f32 0.0, %v542
    %v544 = vpop.f32.mrb[0].mxu0
    %v545 = vpop.f32.mrb[0].mxu0
    %v546 = vadd.f32 0.0, %v545
    %v547 = vpop.f32.mrb[0].mxu0
    %548 = vmatprep.mubr.bf16.mxu0 0
    %549 = vmatmul.mubr.bf16.gmra.mrb[0].mxu0 %v309
    %v550 = vpop.f32.mrb[0].mxu0
    %v551 = vadd.f32 0.0, %v550
    %v552 = vpop.f32.mrb[0].mxu0
    %v553 = vpop.f32.mrb[0].mxu0
    %v554 = vadd.f32 0.0, %v553
    %v555 = vpop.f32.mrb[0].mxu0
    %556 = vmatprep.mubr.bf16.mxu0 0
    %557 = vmatmul.mubr.bf16.gmra.mrb[0].mxu0 %v312
    %v558 = vpop.f32.mrb[0].mxu0
    %v559 = vadd.f32 0.0, %v558
    %v560 = vpop.f32.mrb[0].mxu0
    %v561 = vpop.f32.mrb[0].mxu0
    %v562 = vadd.f32 0.0, %v561
    %v563 = vpop.f32.mrb[0].mxu0
    %564 = vmatprep.mubr.bf16.mxu0 0
    %565 = vmatmul.mubr.bf16.gmra.mrb[0].mxu0 %v315
    %v566 = vpop.f32.mrb[0].mxu0
    %v567 = vadd.f32 0.0, %v566
    %v568 = vpop.f32.mrb[0].mxu0
    %v569 = vpop.f32.mrb[0].mxu0
    %v570 = vadd.f32 0.0, %v569
    %v571 = vpop.f32.mrb[0].mxu0
    %572 = vmatprep.mubr.bf16.mxu0 0
    %573 = vmatmul.mubr.bf16.gmra.mrb[0].mxu0 %v318
    %v574 = vpop.f32.mrb[0].mxu0
    %v575 = vadd.f32 0.0, %v574
    %v576 = vpop.f32.mrb[0].mxu0
    %v577 = vpop.f32.mrb[0].mxu0
    %v578 = vadd.f32 0.0, %v577
    %v579 = vpop.f32.mrb[0].mxu0
    %580 = vmatprep.mubr.bf16.mxu0 0
    %581 = vmatmul.mubr.bf16.gmra.mrb[0].mxu0 %v321
    %v582 = vpop.f32.mrb[0].mxu0
    %v583 = vadd.f32 0.0, %v582
    %v584 = vpop.f32.mrb[0].mxu0
    %v585 = vpop.f32.mrb[0].mxu0
    %v586 = vadd.f32 0.0, %v585
    %v587 = vpop.f32.mrb[0].mxu0
    %588 = vmatprep.mubr.bf16.mxu0 0
    %589 = vmatmul.mubr.bf16.gmra.mrb[0].mxu0 %v324
    %v590 = vpop.f32.mrb[0].mxu0
    %v591 = vadd.f32 0.0, %v590
    %v592 = vpop.f32.mrb[0].mxu0
    %v593 = vpop.f32.mrb[0].mxu0
    %v594 = vadd.f32 0.0, %v593
    %v595 = vpop.f32.mrb[0].mxu0
    %596 = vmatprep.mubr.bf16.mxu0 0
    %597 = vmatmul.mubr.bf16.gmra.mrb[0].mxu0 %v327
    %v598 = vpop.f32.mrb[0].mxu0
    %v599 = vadd.f32 0.0, %v598
    %v600 = vpop.f32.mrb[0].mxu0
    %v601 = vpop.f32.mrb[0].mxu0
    %v602 = vadd.f32 0.0, %v601
    %v603 = vpop.f32.mrb[0].mxu0
    %604 = vmatprep.mubr.bf16.mxu0 0
    %605 = vmatmul.mubr.bf16.gmra.mrb[0].mxu0 %v330
    %v606 = vpop.f32.mrb[0].mxu0
    %v607 = vadd.f32 0.0, %v606
    %v608 = vpop.f32.mrb[0].mxu0
    %v609 = vpop.f32.mrb[0].mxu0
    %v610 = vadd.f32 0.0, %v609
    %v611 = vpop.f32.mrb[0].mxu0
    %612 = vmatprep.mubr.bf16.mxu0 0
    %613 = vmatmul.mubr.bf16.gmra.mrb[0].mxu0 %v333
    %v614 = vpop.f32.mrb[0].mxu0
    %v615 = vadd.f32 0.0, %v614
    %v616 = vpop.f32.mrb[0].mxu0
    %v617 = vpop.f32.mrb[0].mxu0
    %v618 = vadd.f32 0.0, %v617
    %v619 = vpop.f32.mrb[0].mxu0
    %620 = vmatprep.mubr.bf16.mxu0 0
    %621 = vmatmul.mubr.bf16.gmra.mrb[0].mxu0 %v336
    %v622 = vpop.f32.mrb[0].mxu0
    %v623 = vadd.f32 0.0, %v622
    %v624 = vpop.f32.mrb[0].mxu0
    %v625 = vpop.f32.mrb[0].mxu0
    %v626 = vadd.f32 0.0, %v625
    %v627 = vpop.f32.mrb[0].mxu0
    %628 = vmatprep.mubr.bf16.mxu0 0
    %629 = vmatmul.mubr.bf16.gmra.mrb[0].mxu0 %v339
    %v630 = vpop.f32.mrb[0].mxu0
    %v631 = vadd.f32 0.0, %v630
    %v632 = vpop.f32.mrb[0].mxu0
    %v633 = vpop.f32.mrb[0].mxu0
    %v634 = vadd.f32 0.0, %v633
    %v635 = vpop.f32.mrb[0].mxu0
    %636 = vdwg.mxu0
    %v637 = vadd.f32 %v383, %v386
    %v638 = vadd.f32 %v637, %v391
    %v639 = vadd.f32 %v638, %v394
    %v640 = vadd.f32 %v639, %v399
    %v641 = vadd.f32 %v640, %v402
    %v642 = vadd.f32 %v641, %v407
    %v643 = vadd.f32 %v642, %v410
    %v644 = vadd.f32 %v643, %v415
    %v645 = vadd.f32 %v644, %v418
    %v646 = vadd.f32 %v645, %v423
    %v647 = vadd.f32 %v646, %v426
    %v648 = vadd.f32 %v647, %v431
    %v649 = vadd.f32 %v648, %v434
    %v650 = vadd.f32 %v649, %v439
    %v651 = vadd.f32 %v650, %v442
    %v652 = vadd.f32 %v651, %v447
    %v653 = vadd.f32 %v652, %v450
    %v654 = vadd.f32 %v653, %v455
    %v655 = vadd.f32 %v654, %v458
    %v656 = vadd.f32 %v655, %v463
    %v657 = vadd.f32 %v656, %v466
    %v658 = vadd.f32 %v657, %v471
    %v659 = vadd.f32 %v658, %v474
    %v660 = vadd.f32 %v659, %v479
    %v661 = vadd.f32 %v660, %v482
    %v662 = vadd.f32 %v661, %v487
    %v663 = vadd.f32 %v662, %v490
    %v664 = vadd.f32 %v663, %v495
    %v665 = vadd.f32 %v664, %v498
    %v666 = vadd.f32 %v665, %v503
    %v667 = vadd.f32 %v666, %v506
    %v668 = vadd.f32 %v667, %v511
    %v669 = vadd.f32 %v668, %v514
    %v670 = vadd.f32 %v669, %v519
    %v671 = vadd.f32 %v670, %v522
    %v672 = vadd.f32 %v671, %v527
    %v673 = vadd.f32 %v672, %v530
    %v674 = vadd.f32 %v673, %v535
    %v675 = vadd.f32 %v674, %v538
    %v676 = vadd.f32 %v675, %v543
    %v677 = vadd.f32 %v676, %v546
    %v678 = vadd.f32 %v677, %v551
    %v679 = vadd.f32 %v678, %v554
    %v680 = vadd.f32 %v679, %v559
    %v681 = vadd.f32 %v680, %v562
    %v682 = vadd.f32 %v681, %v567
    %v683 = vadd.f32 %v682, %v570
    %v684 = vadd.f32 %v683, %v575
    %v685 = vadd.f32 %v684, %v578
    %v686 = vadd.f32 %v685, %v583
    %v687 = vadd.f32 %v686, %v586
    %v688 = vadd.f32 %v687, %v591
    %v689 = vadd.f32 %v688, %v594
    %v690 = vadd.f32 %v689, %v599
    %v691 = vadd.f32 %v690, %v602
    %v692 = vadd.f32 %v691, %v607
    %v693 = vadd.f32 %v692, %v610
    %v694 = vadd.f32 %v693, %v615
    %v695 = vadd.f32 %v694, %v618
    %v696 = vadd.f32 %v695, %v623
    %v697 = vadd.f32 %v696, %v626
    %v698 = vadd.f32 %v697, %v631
    %v699 = vadd.f32 %v698, %v634
    %v700 = vrot.slane %v699, 4
    %v701 = vadd.f32 %v699, %v700
    %v702 = vrot.slane %v701, 2
    %v703 = vadd.f32 %v701, %v702
    %v704 = vrot.slane %v703, 1
    %v705 = vadd.f32 %v703, %v704
    %706 = vst [vmem:[#allocation2] sm:$0x1] %v705
    %v707 = vmul.f32 %v383, %v383
    %v708 = vmul.f32 %v386, %v386
    %v709 = vmul.f32 %v391, %v391
    %v710 = vmul.f32 %v394, %v394
    %v711 = vmul.f32 %v399, %v399
    %v712 = vmul.f32 %v402, %v402
    %v713 = vmul.f32 %v407, %v407
    %v714 = vmul.f32 %v410, %v410
    %v715 = vmul.f32 %v415, %v415
    %v716 = vmul.f32 %v418, %v418
    %v717 = vmul.f32 %v423, %v423
    %v718 = vmul.f32 %v426, %v426
    %v719 = vmul.f32 %v431, %v431
    %v720 = vmul.f32 %v434, %v434
    %v721 = vmul.f32 %v439, %v439
    %v722 = vmul.f32 %v442, %v442
    %v723 = vmul.f32 %v447, %v447
    %v724 = vmul.f32 %v450, %v450
    %v725 = vmul.f32 %v455, %v455
    %v726 = vmul.f32 %v458, %v458
    %v727 = vmul.f32 %v463, %v463
    %v728 = vmul.f32 %v466, %v466
    %v729 = vmul.f32 %v471, %v471
    %v730 = vmul.f32 %v474, %v474
    %v731 = vmul.f32 %v479, %v479
    %v732 = vmul.f32 %v482, %v482
    %v733 = vmul.f32 %v487, %v487
    %v734 = vmul.f32 %v490, %v490
    %v735 = vmul.f32 %v495, %v495
    %v736 = vmul.f32 %v498, %v498
    %v737 = vmul.f32 %v503, %v503
    %v738 = vmul.f32 %v506, %v506
    %v739 = vmul.f32 %v511, %v511
    %v740 = vmul.f32 %v514, %v514
    %v741 = vmul.f32 %v519, %v519
    %v742 = vmul.f32 %v522, %v522
    %v743 = vmul.f32 %v527, %v527
    %v744 = vmul.f32 %v530, %v530
    %v745 = vmul.f32 %v535, %v535
    %v746 = vmul.f32 %v538, %v538
    %v747 = vmul.f32 %v543, %v543
    %v748 = vmul.f32 %v546, %v546
    %v749 = vmul.f32 %v551, %v551
    %v750 = vmul.f32 %v554, %v554
    %v751 = vmul.f32 %v559, %v559
    %v752 = vmul.f32 %v562, %v562
    %v753 = vmul.f32 %v567, %v567
    %v754 = vmul.f32 %v570, %v570
    %v755 = vmul.f32 %v575, %v575
    %v756 = vmul.f32 %v578, %v578
    %v757 = vmul.f32 %v583, %v583
    %v758 = vmul.f32 %v586, %v586
    %v759 = vmul.f32 %v591, %v591
    %v760 = vmul.f32 %v594, %v594
    %v761 = vmul.f32 %v599, %v599
    %v762 = vmul.f32 %v602, %v602
    %v763 = vmul.f32 %v607, %v607
    %v764 = vmul.f32 %v610, %v610
    %v765 = vmul.f32 %v615, %v615
    %v766 = vmul.f32 %v618, %v618
    %v767 = vmul.f32 %v623, %v623
    %v768 = vmul.f32 %v626, %v626
    %v769 = vmul.f32 %v631, %v631
    %v770 = vmul.f32 %v634, %v634
    %v771 = vadd.f32 %v707, %v708
    %v772 = vadd.f32 %v771, %v709
    %v773 = vadd.f32 %v772, %v710
    %v774 = vadd.f32 %v773, %v711
    %v775 = vadd.f32 %v774, %v712
    %v776 = vadd.f32 %v775, %v713
    %v777 = vadd.f32 %v776, %v714
    %v778 = vadd.f32 %v777, %v715
    %v779 = vadd.f32 %v778, %v716
    %v780 = vadd.f32 %v779, %v717
    %v781 = vadd.f32 %v780, %v718
    %v782 = vadd.f32 %v781, %v719
    %v783 = vadd.f32 %v782, %v720
    %v784 = vadd.f32 %v783, %v721
    %v785 = vadd.f32 %v784, %v722
    %v786 = vadd.f32 %v785, %v723
    %v787 = vadd.f32 %v786, %v724
    %v788 = vadd.f32 %v787, %v725
    %v789 = vadd.f32 %v788, %v726
    %v790 = vadd.f32 %v789, %v727
    %v791 = vadd.f32 %v790, %v728
    %v792 = vadd.f32 %v791, %v729
    %v793 = vadd.f32 %v792, %v730
    %v794 = vadd.f32 %v793, %v731
    %v795 = vadd.f32 %v794, %v732
    %v796 = vadd.f32 %v795, %v733
    %v797 = vadd.f32 %v796, %v734
    %v798 = vadd.f32 %v797, %v735
    %v799 = vadd.f32 %v798, %v736
    %v800 = vadd.f32 %v799, %v737
    %v801 = vadd.f32 %v800, %v738
    %v802 = vadd.f32 %v801, %v739
    %v803 = vadd.f32 %v802, %v740
    %v804 = vadd.f32 %v803, %v741
    %v805 = vadd.f32 %v804, %v742
    %v806 = vadd.f32 %v805, %v743
    %v807 = vadd.f32 %v806, %v744
    %v808 = vadd.f32 %v807, %v745
    %v809 = vadd.f32 %v808, %v746
    %v810 = vadd.f32 %v809, %v747
    %v811 = vadd.f32 %v810, %v748
    %v812 = vadd.f32 %v811, %v749
    %v813 = vadd.f32 %v812, %v750
    %v814 = vadd.f32 %v813, %v751
    %v815 = vadd.f32 %v814, %v752
    %v816 = vadd.f32 %v815, %v753
    %v817 = vadd.f32 %v816, %v754
    %v818 = vadd.f32 %v817, %v755
    %v819 = vadd.f32 %v818, %v756
    %v820 = vadd.f32 %v819, %v757
    %v821 = vadd.f32 %v820, %v758
    %v822 = vadd.f32 %v821, %v759
    %v823 = vadd.f32 %v822, %v760
    %v824 = vadd.f32 %v823, %v761
    %v825 = vadd.f32 %v824, %v762
    %v826 = vadd.f32 %v825, %v763
    %v827 = vadd.f32 %v826, %v764
    %v828 = vadd.f32 %v827, %v765
    %v829 = vadd.f32 %v828, %v766
    %v830 = vadd.f32 %v829, %v767
    %v831 = vadd.f32 %v830, %v768
    %v832 = vadd.f32 %v831, %v769
    %v833 = vadd.f32 %v832, %v770
    %v834 = vrot.slane %v833, 4
    %v835 = vadd.f32 %v833, %v834
    %v836 = vrot.slane %v835, 2
    %v837 = vadd.f32 %v835, %v836
    %v838 = vrot.slane %v837, 1
    %v839 = vadd.f32 %v837, %v838
    %840 = vst [vmem:[#allocation2 + $0x1] sm:$0x1] %v839
    // Predicated region
    $region10: #{tpu_custom_call.1} parent=1 // pred_check
      _
    $region11: #{tpu_custom_call.1} parent=1 // pred_check_branch
      %842 = sbr.rel (0) target = $region13
    $region12: #{tpu_custom_call.1} parent=1 // pred_region
      %s844 = ssub.s32 32, 32
      %845 = vsyncadd [#allocation3], %s844
      %s847 = sshll.u32 [#allocation2], 4
      %s848 = int_to_ptr.vmem [resolvable:$true] %s847
      %850 = dma.vmem_to_hbm [thread:$0]  %s848, 32, %s2, [#allocation3]
    $region13: #{tpu_custom_call.1} parent=1 // pred_fallthru
      _
    // Predicated region
    $region14: #{tpu_custom_call.1} parent=1 // pred_check
      _
    $region15: #{tpu_custom_call.1} parent=1 // pred_check_branch
      %852 = sbr.rel (0) target = $region17
    $region16: #{tpu_custom_call.1} parent=1 // pred_region
      %853 = dma.done [#allocation3], 32
    $region17: #{tpu_custom_call.1} parent=1 // pred_fallthru
      _
    %854 = vsyncpa [#allocation3], 1

</llo_original>
